<compile_context>
chip_gen: v7x
topology: tpu7x:2x2x1
jax: 0.10.0
libtpu: 0.0.40
codegen_flags: <defaults>
</compile_context>

<pallas_src>
import jax
import jax.numpy as jnp
from jax.experimental import pallas as pl
from jax.experimental.pallas import tpu as pltpu


def _linear_relu_kernel(x_ref, w_ref, b_ref, o_ref):
    # x_ref: (Bblk, K), w_ref: (K, N) canonical layout, b_ref: (1, N) f32,
    # o_ref: (Bblk, N).
    acc = jnp.dot(x_ref[...], w_ref[...], preferred_element_type=jnp.float32)
    acc = acc + b_ref[...]                       # f32 bias broadcast over rows
    o_ref[...] = jnp.maximum(acc, 0.0).astype(o_ref.dtype)


def _round_up(x, m):
    return ((x + m - 1) // m) * m


def linear_relu(x, weight, bias, *, block_b=2048, small_b=512, use_bf16=False):
    """relu(x @ weight.T + bias).

    x: (B, K), weight: (N, K) (PyTorch nn.Linear layout), bias: (N,).
    Returns (B, N) in x.dtype (f32 epilogue / accumulation regardless of
    use_bf16).
    """
    B, K = x.shape
    N, K2 = weight.shape
    assert K == K2, (K, K2)

    out_dtype = x.dtype
    # One-time layout fix: canonical (K, N) MXU feed (N in lanes).
    w_t = jnp.transpose(weight)                      # (K, N)
    b2 = bias.reshape(1, N).astype(jnp.float32)      # f32 epilogue

    if use_bf16:
        x_in = x.astype(jnp.bfloat16)
        w_in = w_t.astype(jnp.bfloat16)
    else:
        x_in = x
        w_in = w_t

    in_isz = jnp.dtype(x_in.dtype).itemsize
    w_isz = jnp.dtype(w_in.dtype).itemsize
    out_isz = jnp.dtype(out_dtype).itemsize
    cost = pl.CostEstimate(
        flops=2 * B * K * N,
        transcendentals=0,
        bytes_accessed=(B * K * in_isz + K * N * w_isz
                        + N * 4 + B * N * out_isz),
    )

    if B <= small_b:
        # Latency-bound case (e.g. B=1): single invocation, whole operands in
        # VMEM, no grid -> no pipelining prologue overhead.  Dominated by
        # dispatch + the 64 KiB weight fetch; nothing in-kernel moves it.
        return pl.pallas_call(
            _linear_relu_kernel,
            out_shape=jax.ShapeDtypeStruct((B, N), out_dtype),
            in_specs=[
                pl.BlockSpec(memory_space=pltpu.MemorySpace.VMEM),
                pl.BlockSpec(memory_space=pltpu.MemorySpace.VMEM),
                pl.BlockSpec(memory_space=pltpu.MemorySpace.VMEM),
            ],
            out_specs=pl.BlockSpec(memory_space=pltpu.MemorySpace.VMEM),
            cost_estimate=cost,
        )(x_in, w_in, b2)

    # ---------------- batched path ----------------
    # Keep the grid >= 2 blocks when possible (v7x: both TensorCores busy),
    # but never exceed the requested tile.
    bb = min(block_b, max(_round_up((B + 1) // 2, 8), 8))

    # VMEM budget guard (v7x has 64 MiB physical; keep well under).
    # TODO(synk): tile N (and K with an f32 VMEM accumulator) when the
    # resident weight alone blows the budget; not needed at K=256, N=64.
    def _footprint(b):
        return (2 * b * K * in_isz          # double-buffered x tiles
                + 2 * b * N * out_isz       # double-buffered out tiles
                + 2 * K * N * w_isz         # weight (double-buffered by default)
                + 2 * N * 4)                # bias
    budget = 48 * 1024 * 1024
    while _footprint(bb) > budget and bb > 256:
        bb = _round_up(bb // 2, 8)

    vmem_limit = min(64 * 1024 * 1024,
                     max(32 * 1024 * 1024, _footprint(bb) + (4 << 20)))

    grid = (pl.cdiv(B, bb),)
    return pl.pallas_call(
        _linear_relu_kernel,
        out_shape=jax.ShapeDtypeStruct((B, N), out_dtype),
        grid_spec=pl.GridSpec(
            grid=grid,
            in_specs=[
                pl.BlockSpec((bb, K), lambda i: (i, 0)),
                pl.BlockSpec((K, N), lambda i: (0, 0)),   # grid-invariant
                pl.BlockSpec((1, N), lambda i: (0, 0)),   # grid-invariant
            ],
            out_specs=pl.BlockSpec((bb, N), lambda i: (i, 0)),
        ),
        compiler_params=pltpu.CompilerParams(
            dimension_semantics=("parallel",),
            vmem_limit_bytes=vmem_limit,
        ),
        cost_estimate=cost,
    )(x_in, w_in, b2)


if __name__ == "__main__":
    key = jax.random.PRNGKey(0)
    kx, kw, kb, kx2 = jax.random.split(key, 4)

    # Module spec: Linear(256 -> 64) + ReLU, input x1 of shape (1, 256)
    B, K, N = 1, 256, 64
    x1 = jax.random.normal(kx, (B, K), dtype=jnp.float32)
    bound = 1.0 / (K ** 0.5)   # mimic nn.Linear uniform(-1/sqrt(K), 1/sqrt(K))
    weight = jax.random.uniform(kw, (N, K), minval=-bound, maxval=bound,
                                dtype=jnp.float32)
    bias = jax.random.uniform(kb, (N,), minval=-bound, maxval=bound,
                              dtype=jnp.float32)

    # 1) Latency path (the module's actual shape).
    out = linear_relu(x1, weight, bias)
    jax.block_until_ready(out)
    ref = jnp.maximum(x1 @ weight.T + bias, 0.0)
    assert out.shape == (B, N)
    assert jnp.allclose(out, ref, atol=1e-5, rtol=1e-5)

    # 2) Batched / pipelined path, f32, non-divisible B (ragged last tile).
    Bb = 2560
    xb = jax.random.normal(kx2, (Bb, K), dtype=jnp.float32)
    outb = linear_relu(xb, weight, bias)
    jax.block_until_ready(outb)
    refb = jnp.maximum(xb @ weight.T + bias, 0.0)
    assert outb.shape == (Bb, N)
    assert jnp.allclose(outb, refb, atol=1e-4, rtol=1e-4)

    # 3) Batched path with bf16 storage (f32 accumulation) -- loose tolerance.
    outb16 = linear_relu(xb, weight, bias, use_bf16=True)
    jax.block_until_ready(outb16)
    assert jnp.allclose(outb16, refb, atol=5e-2, rtol=2e-2)

    print("KERNEL_OK")
</pallas_src>

<mosaic_0001>
module attributes {stable_mosaic.version = 11 : i64} {
  func.func @_linear_relu_kernel(%arg0: memref<1x256xf32, #tpu.memory_space<vmem>>, %arg1: memref<256x64xf32, #tpu.memory_space<vmem>>, %arg2: memref<1x64xf32, #tpu.memory_space<vmem>>, %arg3: memref<1x64xf32, #tpu.memory_space<vmem>>) attributes {dimension_semantics = [], scalar_prefetch = 0 : i64, scratch_operands = 0 : i64, tpu.core_type = #tpu.core_type<tc>} {
    %c0 = arith.constant 0 : index
    %c0_0 = arith.constant 0 : index
    %0 = vector.load %arg0[%c0, %c0_0] : memref<1x256xf32, #tpu.memory_space<vmem>>, vector<1x256xf32>
    %c0_1 = arith.constant 0 : index
    %c0_2 = arith.constant 0 : index
    %1 = vector.load %arg1[%c0_1, %c0_2] : memref<256x64xf32, #tpu.memory_space<vmem>>, vector<256x64xf32>
    %cst = arith.constant dense<0.000000e+00> : vector<1x64xf32>
    %2 = tpu.matmul %0, %1, %cst {dimension_numbers = #tpu.dot_dimension_numbers<[1], [0], [0], [1], [0, 0, 1, 1], [], []>} : vector<1x256xf32>, vector<256x64xf32>, vector<1x64xf32> -> vector<1x64xf32>
    %c0_3 = arith.constant 0 : index
    %c0_4 = arith.constant 0 : index
    %3 = vector.load %arg2[%c0_3, %c0_4] : memref<1x64xf32, #tpu.memory_space<vmem>>, vector<1x64xf32>
    %4 = arith.addf %2, %3 : vector<1x64xf32>
    %cst_5 = arith.constant 0.000000e+00 : f32
    %5 = vector.broadcast %cst_5 : f32 to vector<1x64xf32>
    %6 = arith.maximumf %4, %5 : vector<1x64xf32>
    %c0_6 = arith.constant 0 : index
    %c0_7 = arith.constant 0 : index
    %7 = vector.load %arg3[%c0_6, %c0_7] : memref<1x64xf32, #tpu.memory_space<vmem>>, vector<1x64xf32>
    tpu.vector_store %arg3[%c0_6, %c0_7], %6 {strides = array<i32>} : memref<1x64xf32, #tpu.memory_space<vmem>>, vector<1x64xf32>,
    return
  }
}

</mosaic_0001>

<llo_original>
// kernel: tpu_custom_call.1
$region0: #{tpu_custom_call.1}
  #allocation0 [shape = 'u32[]', space=smem, size = 0x4, offset = 0x4, fixed_abs, tag = 'smem constant byte address 0x4 - core index']
  #allocation1 [shape = 'u32[144,128]{1,0:T(1,128)}', space=vmem, size = 0x12000, scoped, tag = 'internal scratch']
  %s0 = inlined_call_operand.vmem [shape: f32[1,256], index: 0, kind: input, shape index: {}]
  %s1 = inlined_call_operand.vmem [shape: f32[256,64], index: 1, kind: input, shape index: {}]
  %s2 = inlined_call_operand.vmem [shape: f32[1,64], index: 2, kind: input, shape index: {}]
  %s3 = inlined_call_operand.hbm [shape: f32[1,64], index: 3, kind: output, shape index: {}]
  %s4 = sld [smem:[#allocation0]]
  $region22: #{tpu_custom_call.1} parent=0
    _
  %s6 = ssub.s32 1, %s4
  %s7 = scalar_select 0, %s6, %s4
  $region1: #{tpu_custom_call.1} parent=0
    #allocation2 [shape = 'u8[512]{0}', space=vmem, size = 0x400, scoped, tag = 'output window, operand 0, single buffered']
    #allocation3 [shape = 's32[1]{0}', space=sflag, size = 0x4, scoped, tag = 'scoped memory for tpu_custom_call.1']
    %8 = vsyncpa [#allocation3], 0
    // Predicated region
    $region2: #{tpu_custom_call.1} parent=1 // pred_check
      _
    $region3: #{tpu_custom_call.1} parent=1 // pred_check_branch
      %10 = sbr.rel (0) target = $region5
    $region4: #{tpu_custom_call.1} parent=1 // pred_region
      _
    $region5: #{tpu_custom_call.1} parent=1 // pred_fallthru
      _
    // Predicated region
    $region6: #{tpu_custom_call.1} parent=1 // pred_check
      _
    $region7: #{tpu_custom_call.1} parent=1 // pred_check_branch
      %12 = sbr.rel (0) target = $region9
    $region8: #{tpu_custom_call.1} parent=1 // pred_region
      _
    $region9: #{tpu_custom_call.1} parent=1 // pred_fallthru
      _
    // Predicated region
    $region10: #{tpu_custom_call.1} parent=1 // pred_check
      _
    $region11: #{tpu_custom_call.1} parent=1 // pred_check_branch
      %14 = sbr.rel (0) target = $region13
    $region12: #{tpu_custom_call.1} parent=1 // pred_region
      _
    $region13: #{tpu_custom_call.1} parent=1 // pred_fallthru
      _
    %v15 = vld [vmem:[%s0] sm:$0x3]
    %v16 = vld [vmem:[%s1] sm:$0xff]
    %v17 = vld [vmem:[%s1 + $0x8] sm:$0xff]
    %v18 = vld [vmem:[%s1 + $0x10] sm:$0xff]
    %v19 = vld [vmem:[%s1 + $0x18] sm:$0xff]
    %v20 = vld [vmem:[%s1 + $0x20] sm:$0xff]
    %v21 = vld [vmem:[%s1 + $0x28] sm:$0xff]
    %v22 = vld [vmem:[%s1 + $0x30] sm:$0xff]
    %v23 = vld [vmem:[%s1 + $0x38] sm:$0xff]
    %v24 = vld [vmem:[%s1 + $0x40] sm:$0xff]
    %v25 = vld [vmem:[%s1 + $0x48] sm:$0xff]
    %v26 = vld [vmem:[%s1 + $0x50] sm:$0xff]
    %v27 = vld [vmem:[%s1 + $0x58] sm:$0xff]
    %v28 = vld [vmem:[%s1 + $0x60] sm:$0xff]
    %v29 = vld [vmem:[%s1 + $0x68] sm:$0xff]
    %v30 = vld [vmem:[%s1 + $0x70] sm:$0xff]
    %v31 = vld [vmem:[%s1 + $0x78] sm:$0xff]
    %v32 = vld [vmem:[%s1 + $0x80] sm:$0xff]
    %v33 = vld [vmem:[%s1 + $0x88] sm:$0xff]
    %v34 = vld [vmem:[%s1 + $0x90] sm:$0xff]
    %v35 = vld [vmem:[%s1 + $0x98] sm:$0xff]
    %v36 = vld [vmem:[%s1 + $0xa0] sm:$0xff]
    %v37 = vld [vmem:[%s1 + $0xa8] sm:$0xff]
    %v38 = vld [vmem:[%s1 + $0xb0] sm:$0xff]
    %v39 = vld [vmem:[%s1 + $0xb8] sm:$0xff]
    %v40 = vld [vmem:[%s1 + $0xc0] sm:$0xff]
    %v41 = vld [vmem:[%s1 + $0xc8] sm:$0xff]
    %v42 = vld [vmem:[%s1 + $0xd0] sm:$0xff]
    %v43 = vld [vmem:[%s1 + $0xd8] sm:$0xff]
    %v44 = vld [vmem:[%s1 + $0xe0] sm:$0xff]
    %v45 = vld [vmem:[%s1 + $0xe8] sm:$0xff]
    %v46 = vld [vmem:[%s1 + $0xf0] sm:$0xff]
    %v47 = vld [vmem:[%s1 + $0xf8] sm:$0xff]
    %v48 = vld [vmem:[%s2] sm:$0x1]
    %v50 = vlaneseq
    %v51 = vshrl.u32 %v50, 7
    %v52 = vsub.s32 0, %v51
    %v53 = vrot.slane %v15, %v52
    %v54 = vlaneseq
    %v55 = vshrl.u32 %v54, 7
    %v56 = vsub.s32 1, %v55
    %v57 = vrot.slane %v15, %v56
    %60 = vmatprep.subr.mxu0 0.0
    %61 = vmatpush1.msra.mxu0 %v16
    %62 = vmatprep.subr.mxu0 0.0
    %63 = vmatpush1.msra.mxu0 %v17
    %64 = vmatprep.subr.mxu0 0.0
    %65 = vmatpush1.msra.mxu0 %v18
    %66 = vmatprep.subr.mxu0 0.0
    %67 = vmatpush1.msra.mxu0 %v19
    %68 = vmatprep.subr.mxu0 0.0
    %69 = vmatpush1.msra.mxu0 %v20
    %70 = vmatprep.subr.mxu0 0.0
    %71 = vmatpush1.msra.mxu0 %v21
    %72 = vmatprep.subr.mxu0 0.0
    %73 = vmatpush1.msra.mxu0 %v22
    %74 = vmatprep.subr.mxu0 0.0
    %75 = vmatpush1.msra.mxu0 %v23
    %76 = vmatprep.subr.mxu0 0.0
    %77 = vmatpush1.msra.mxu0 %v24
    %78 = vmatprep.subr.mxu0 0.0
    %79 = vmatpush1.msra.mxu0 %v25
    %80 = vmatprep.subr.mxu0 0.0
    %81 = vmatpush1.msra.mxu0 %v26
    %82 = vmatprep.subr.mxu0 0.0
    %83 = vmatpush1.msra.mxu0 %v27
    %84 = vmatprep.subr.mxu0 0.0
    %85 = vmatpush1.msra.mxu0 %v28
    %86 = vmatprep.subr.mxu0 0.0
    %87 = vmatpush1.msra.mxu0 %v29
    %88 = vmatprep.subr.mxu0 0.0
    %89 = vmatpush1.msra.mxu0 %v30
    %90 = vmatprep.subr.mxu0 0.0
    %91 = vmatpush1.msra.mxu0 %v31
    %92 = vmatprep.subr.mxu0 0.0
    %93 = vmatpush1.msra.mxu0 %v32
    %94 = vmatprep.subr.mxu0 0.0
    %95 = vmatpush1.msra.mxu0 %v33
    %96 = vmatprep.subr.mxu0 0.0
    %97 = vmatpush1.msra.mxu0 %v34
    %98 = vmatprep.subr.mxu0 0.0
    %99 = vmatpush1.msra.mxu0 %v35
    %100 = vmatprep.subr.mxu0 0.0
    %101 = vmatpush1.msra.mxu0 %v36
    %102 = vmatprep.subr.mxu0 0.0
    %103 = vmatpush1.msra.mxu0 %v37
    %104 = vmatprep.subr.mxu0 0.0
    %105 = vmatpush1.msra.mxu0 %v38
    %106 = vmatprep.subr.mxu0 0.0
    %107 = vmatpush1.msra.mxu0 %v39
    %108 = vmatprep.subr.mxu0 0.0
    %109 = vmatpush1.msra.mxu0 %v40
    %110 = vmatprep.subr.mxu0 0.0
    %111 = vmatpush1.msra.mxu0 %v41
    %112 = vmatprep.subr.mxu0 0.0
    %113 = vmatpush1.msra.mxu0 %v42
    %114 = vmatprep.subr.mxu0 0.0
    %115 = vmatpush1.msra.mxu0 %v43
    %116 = vmatprep.subr.mxu0 0.0
    %117 = vmatpush1.msra.mxu0 %v44
    %118 = vmatprep.subr.mxu0 0.0
    %119 = vmatpush1.msra.mxu0 %v45
    %120 = vmatprep.subr.mxu0 0.0
    %121 = vmatpush1.msra.mxu0 %v46
    %122 = vmatprep.subr.mxu0 0.0
    %123 = vmatpush1.msra.mxu0 %v47
    %124 = vmatprep.mubr.f32.mxu0 %v57
    %125 = vmatmul.mubr.f32.gmra.mrb[0].mxu0 %v53
    %v126 = vpop.f32.mrb[0].mxu0
    %v127 = vadd.f32 %v48, %v126
    %v128 = vpop.f32.mrb[0].mxu0
    %129 = vdwg.mxu0
    %v130 = vmax.f32 %v127, 0.0
    %vm131 = vcmask 516096
    %132 = vst.msk [vmem:[#allocation2] sm:$0x1] %vm131, %v130
    // Predicated region
    $region14: #{tpu_custom_call.1} parent=1 // pred_check
      _
    $region15: #{tpu_custom_call.1} parent=1 // pred_check_branch
      %134 = sbr.rel (0) target = $region17
    $region16: #{tpu_custom_call.1} parent=1 // pred_region
      %s136 = ssub.s32 16, 16
      %137 = vsyncadd [#allocation3], %s136
      %s139 = sshll.u32 [#allocation2], 4
      %s140 = int_to_ptr.vmem [resolvable:$true] %s139
      %142 = dma.vmem_to_hbm [thread:$0]  %s140, 16, %s3, [#allocation3]
    $region17: #{tpu_custom_call.1} parent=1 // pred_fallthru
      _
    // Predicated region
    $region18: #{tpu_custom_call.1} parent=1 // pred_check
      _
    $region19: #{tpu_custom_call.1} parent=1 // pred_check_branch
      %144 = sbr.rel (0) target = $region21
    $region20: #{tpu_custom_call.1} parent=1 // pred_region
      %145 = dma.done [#allocation3], 16
    $region21: #{tpu_custom_call.1} parent=1 // pred_fallthru
      _
    %146 = vsyncpa [#allocation3], 1

</llo_original>
